<compile_context>
chip_gen: v7x
topology: tpu7x:2x2x1
jax: 0.10.0
libtpu: 0.0.40
codegen_flags: <defaults>
</compile_context>

<pallas_src>
import functools
import math

import jax
import jax.numpy as jnp
from jax.experimental import pallas as pl
from jax.experimental.pallas import tpu as pltpu

_LANE = 128


def _mean_over_k_kernel(x_ref, o_ref, *, inv_k: float):
    """x_ref: (K, TILE) block, o_ref: (1, TILE) block.

    Sum over the (small) K axis in-block and scale by 1/K.
    """
    acc = jnp.sum(x_ref[...].astype(jnp.float32), axis=0, keepdims=True)
    o_ref[...] = (acc * inv_k).astype(o_ref.dtype)


@functools.partial(jax.jit, static_argnames=("out_shape", "max_tile_elems"))
def sum_kernel_forward(stacked: jax.Array, out_shape, max_tile_elems: int = 512 * _LANE):
    """Mean over the leading K axis of `stacked`, reshaped to `out_shape`.

    stacked: (K, Q_out, Q_in, num_P, dim_out, dim_in) sub-kernel tensors.
    Returns: (Q_out, Q_in, num_P, dim_out, dim_in) == sum_k(stacked) / K.
    """
    K = stacked.shape[0]
    total = math.prod(out_shape)

    # Free metadata-only view: (K, total).  No padding copy in HBM.
    flat = stacked.reshape(K, total)

    # Tile the flattened axis.  Block last dim must be a multiple of 128
    # or equal to the full extent; a whole-array block always satisfies this.
    if total <= max_tile_elems:
        tile = total
    else:
        tile = (max_tile_elems // _LANE) * _LANE

    grid = (pl.cdiv(total, tile),)

    mean_flat = pl.pallas_call(
        functools.partial(_mean_over_k_kernel, inv_k=1.0 / K),
        out_shape=jax.ShapeDtypeStruct((1, total), stacked.dtype),
        grid_spec=pltpu.PrefetchScalarGridSpec(
            num_scalar_prefetch=0,
            grid=grid,
            in_specs=[pl.BlockSpec((K, tile), lambda j: (0, j))],
            out_specs=pl.BlockSpec((1, tile), lambda j: (0, j)),
        ),
        compiler_params=pltpu.CompilerParams(
            dimension_semantics=("parallel",),
        ),
    )(flat)

    return mean_flat.reshape(out_shape)


def make_sub_kernels(key, num_kernels, q_out, q_in, num_p, dim_out, dim_in):
    """Deterministic stand-ins for the KernelDefinitionInterface sub-kernels."""
    # TODO(synk): real sub-kernels (SH / radial-basis kernel definitions) are
    # opaque in the spec; synthesize deterministic parameter tensors instead.
    keys = jax.random.split(key, num_kernels)
    tensors = [
        jax.random.normal(k, (q_out, q_in, num_p, dim_out, dim_in), jnp.float32)
        for k in keys
    ]
    return jnp.stack(tensors, axis=0)  # (K, Q_out, Q_in, P, dim_out, dim_in)


if __name__ == "__main__":
    # Small shapes consistent with the module's contract:
    # kernel: (Q_out, Q_in, num_P_diff_vectors, type_out.dim, type_in.dim)
    num_kernels = 3
    Q_out, Q_in = 2, 2
    num_P = 8
    dim_out, dim_in = 8, 16
    out_shape = (Q_out, Q_in, num_P, dim_out, dim_in)  # total = 4096 elements

    key = jax.random.PRNGKey(0)
    stacked = make_sub_kernels(
        key, num_kernels, Q_out, Q_in, num_P, dim_out, dim_in
    )

    # Small tile here so the example exercises the multi-step "parallel" grid
    # (total=4096 -> 4 grid steps); real sizes use the default 512*128 tile.
    out = sum_kernel_forward(stacked, out_shape, max_tile_elems=8 * _LANE)
    out = jax.block_until_ready(out)

    # Reference: stack + sum(dim=0) / K  (== mean over K)
    ref = jnp.sum(stacked, axis=0) / num_kernels

    assert out.shape == ref.shape, (out.shape, ref.shape)
    assert jnp.allclose(out, ref, atol=1e-6, rtol=1e-6), float(
        jnp.max(jnp.abs(out - ref))
    )
    print("KERNEL_OK")
</pallas_src>

<mosaic_0001>
module attributes {stable_mosaic.version = 11 : i64} {
  func.func @_mean_over_k_kernel(%arg0: i32, %arg1: memref<3x1024xf32, #tpu.memory_space<vmem>>, %arg2: memref<1x1024xf32, #tpu.memory_space<vmem>>) attributes {dimension_semantics = [#tpu.dimension_semantics<parallel>], iteration_bounds = array<i64: 4>, scalar_prefetch = 0 : i64, scratch_operands = 0 : i64, tpu.core_type = #tpu.core_type<tc>, window_params = [{transform_indices = @transform_0, window_bounds = array<i64: 3, 1024>}, {transform_indices = @transform_1, window_bounds = array<i64: 1, 1024>}]} {
    %c0 = arith.constant 0 : index
    %c0_0 = arith.constant 0 : index
    %0 = vector.load %arg1[%c0, %c0_0] : memref<3x1024xf32, #tpu.memory_space<vmem>>, vector<3x1024xf32>
    %cst = arith.constant dense<0.000000e+00> : vector<1024xf32>
    %1 = vector.multi_reduction <add>, %0, %cst [0] : vector<3x1024xf32> to vector<1024xf32>
    %2 = vector.shape_cast %1 : vector<1024xf32> to vector<1x1024xf32>
    %cst_1 = arith.constant 0.333333343 : f32
    %3 = vector.broadcast %cst_1 : f32 to vector<1x1024xf32>
    %4 = arith.mulf %2, %3 : vector<1x1024xf32>
    %c0_2 = arith.constant 0 : index
    %c0_3 = arith.constant 0 : index
    %5 = vector.load %arg2[%c0_2, %c0_3] : memref<1x1024xf32, #tpu.memory_space<vmem>>, vector<1x1024xf32>
    tpu.vector_store %arg2[%c0_2, %c0_3], %4 {strides = array<i32>} : memref<1x1024xf32, #tpu.memory_space<vmem>>, vector<1x1024xf32>,
    return
  }
  func.func @transform_0(%arg0: i32) -> (i32, i32) {
    %c0_i32 = arith.constant 0 : i32
    %c0_i32_0 = arith.constant 0 : i32
    return %c0_i32, %arg0 : i32, i32
  }
  func.func @transform_1(%arg0: i32) -> (i32, i32) {
    %c0_i32 = arith.constant 0 : i32
    %c0_i32_0 = arith.constant 0 : i32
    return %c0_i32, %arg0 : i32, i32
  }
}

</mosaic_0001>

<llo_original>
// kernel: sum_kernel_forward.1
$region0: #{sum_kernel_forward.1}
  #allocation0 [shape = 'u32[]', space=smem, size = 0x4, offset = 0x4, fixed_abs, tag = 'smem constant byte address 0x4 - core index']
  #allocation1 [shape = 'u32[144,128]{1,0:T(1,128)}', space=vmem, size = 0x12000, scoped, tag = 'internal scratch']
  %s0 = inlined_call_operand.vmem [shape: f32[3,4096], index: 0, kind: input, shape index: {}]
  %s1 = inlined_call_operand.vmem [shape: f32[1,4096], index: 1, kind: output, shape index: {}]
  %s2 = sld [smem:[#allocation0]]
  $region37: #{sum_kernel_forward.1} parent=0
    _
  %s4 = ssub.s32 1, %s2
  %s5 = scalar_select 0, %s4, %s2
  loop: start=0, step=1, limit=6
  $region2: #{sum_kernel_forward.1} parent=0 // loop_pre_header
    _
  $region3: #{sum_kernel_forward.1} parent=0 // loop_header
    %s7 = sphi 0, %s11
    %p8 = scmp.ge.s32.totalorder %s7, 6
    %s17 = sphi 0, %s19
    %s20 = sphi 0, %s17
    %s21 = sphi 0, %s20
    %s37 = sphi 0, %s21
    %s43 = sphi 0, %s45
    %s46 = sphi 0, %s43
    %s47 = sphi 0, %s46
    %s63 = sphi 0, %s47
  $region4: #{sum_kernel_forward.1} parent=0 // loop_header_branch
    %10 = sbr.rel (%p8) target = $region8
  $region5: #{sum_kernel_forward.1} parent=0 // loop_body
    %s12 = ssub.s32 %s7, 1
    %s13 = ssub.s32 %s7, 2
    %s14 = sadd.s32 %s7, 1
    %s15 = ssub.s32 %s7, %s14
    %p16 = scmp.eq.s32.totalorder %s15, 0
    %s18 = sadd.s32 %s17, 1
    %s19 = scalar_select %p16, %s17, %s18
    %p22 = pneg %p16
    %p23 = scmp.eq.s32.totalorder %s7, 3
    %p24 = por %p22, %p23
    %p25 = scmp.ne.s32.totalorder %s17, %s20
    %p26 = scmp.eq.s32.totalorder %s7, 0
    %p27 = por %p25, %p26
    %p28 = scmp.ne.s32.totalorder %s17, %s20
    %p29 = scmp.eq.s32.totalorder %s12, 3
    %p30 = por %p28, %p29
    %p31 = scmp.ne.s32.totalorder %s20, %s21
    %p32 = scmp.eq.s32.totalorder %s12, 0
    %p33 = por %p31, %p32
    %p34 = scmp.ne.s32.totalorder %s20, %s21
    %p35 = scmp.eq.s32.totalorder %s13, 3
    %p36 = por %p34, %p35
    %p38 = scmp.ne.s32.totalorder %s21, %s37
    %p39 = scmp.eq.s32.totalorder %s13, 0
    %p40 = por %p38, %p39
    %s41 = ssub.s32 %s7, %s14
    %p42 = scmp.eq.s32.totalorder %s41, 0
    %s44 = sadd.s32 %s43, 1
    %s45 = scalar_select %p42, %s43, %s44
    %p48 = pneg %p42
    %p49 = scmp.eq.s32.totalorder %s7, 3
    %p50 = por %p48, %p49
    %p51 = scmp.ne.s32.totalorder %s43, %s46
    %p52 = scmp.eq.s32.totalorder %s7, 0
    %p53 = por %p51, %p52
    %p54 = scmp.ne.s32.totalorder %s43, %s46
    %p55 = scmp.eq.s32.totalorder %s12, 3
    %p56 = por %p54, %p55
    %p57 = scmp.ne.s32.totalorder %s46, %s47
    %p58 = scmp.eq.s32.totalorder %s12, 0
    %p59 = por %p57, %p58
    %p60 = scmp.ne.s32.totalorder %s46, %s47
    %p61 = scmp.eq.s32.totalorder %s13, 3
    %p62 = por %p60, %p61
    %p64 = scmp.ne.s32.totalorder %s47, %s63
    %p65 = scmp.eq.s32.totalorder %s13, 0
    %p66 = por %p64, %p65
    %p67 = scmp.le.s32.totalorder 1, %s7
    %p68 = scmp.lt.s32.totalorder %s7, 5
    %p69 = pnand %p67, %p68
    %p70 = pneg %p69
    // Predicated region
    $region9: #{sum_kernel_forward.1} parent=5 // pred_check
      _
    $region10: #{sum_kernel_forward.1} parent=5 // pred_check_branch
      %72 = sbr.rel (%p69) target = $region12
    $region11: #{sum_kernel_forward.1} parent=5 // pred_region
      %s73 = ssub.s32 %s7, 1
    $region12: #{sum_kernel_forward.1} parent=5 // pred_fallthru
      _
    %p74 = scmp.lt.s32.totalorder %s7, 4
    // Predicated region
    $region13: #{sum_kernel_forward.1} parent=5 // pred_check
      %p75 = pneg %p74
    $region14: #{sum_kernel_forward.1} parent=5 // pred_check_branch
      %77 = sbr.rel (%p75) target = $region16
    $region15: #{sum_kernel_forward.1} parent=5 // pred_region
      // Predicated region
      $region17: #{sum_kernel_forward.1} parent=15 // pred_check
        %p78 = pneg %p27
      $region18: #{sum_kernel_forward.1} parent=15 // pred_check_branch
        %80 = sbr.rel (%p78) target = $region20
      $region19: #{sum_kernel_forward.1} parent=15 // pred_region
        %s81 = smul.u32 8, %s7
        %p82 = scmp.lt.s32.totalorder %s81, 31
        %s83 = scalar_select %p82, %s81, 31
        %s84 = smul.addr %s83, 4
        %s85 = scalar_lea.vmem %s0, %s84
        %s86 = smul.u32 8, %s7
      $region20: #{sum_kernel_forward.1} parent=15 // pred_fallthru
        _
    $region16: #{sum_kernel_forward.1} parent=5 // pred_fallthru
      _
    %p87 = scmp.le.s32.totalorder 1, %s7
    %p88 = scmp.lt.s32.totalorder %s7, 5
    %p89 = pnand %p87, %p88
    %p90 = pneg %p89
    // Predicated region
    $region21: #{sum_kernel_forward.1} parent=5 // pred_check
      _
    $region22: #{sum_kernel_forward.1} parent=5 // pred_check_branch
      %92 = sbr.rel (%p89) target = $region24
    $region23: #{sum_kernel_forward.1} parent=5 // pred_region
      %s93 = ssub.s32 %s7, 1
      %s94 = smul.u32 8, %s12
      %p95 = scmp.lt.s32.totalorder %s94, 31
      %s96 = scalar_select %p95, %s94, 31
      %s97 = smul.addr %s96, 4
      %s98 = scalar_lea.vmem %s0, %s97
      %p99 = pneg %p33
      %p100 = pneg %p30
      %p101 = pneg %p59
      %p102 = pneg %p56
      %s103 = smul.u32 8, %s12
      %p104 = scmp.lt.s32.totalorder %s103, 31
      %s105 = scalar_select %p104, %s103, 31
      %s106 = scalar_lea.vmem %s1, %s105
      %s107 = smul.u32 8, %s12
      %p108 = scmp.lt.s32.totalorder %s107, 31
      %s109 = scalar_select %p108, %s107, 31
      %s110 = smul.addr %s109, 4
      %s111 = scalar_lea.vmem %s0, %s110
      %s112 = smul.u32 8, %s12
      %s113 = smul.u32 8, %s12
      %p114 = scmp.lt.s32.totalorder %s113, 31
      %s115 = scalar_select %p114, %s113, 31
      %s116 = scalar_lea.vmem %s1, %s115
      %s117 = smul.u32 8, %s12
      %v118 = vld [vmem:[%s111] sm:$0x77]
      %v119 = vld [vmem:[%s111 + $0x8] sm:$0x77]
      %v120 = vld [vmem:[%s111 + $0x10] sm:$0x77]
      %v121 = vld [vmem:[%s111 + $0x18] sm:$0x77]
      %v126 = vcombine.high %v118, %v118
      %v127 = vcombine.high %v119, %v119
      %v128 = vcombine.high %v120, %v120
      %v129 = vcombine.high %v121, %v121
      %vm134 = vcmask 1042432
      %v135 = vsel %vm134, %v118, 0.0
      %v136 = vrot.slane %v135, 4
      %v137 = vadd.f32 %v135, %v136
      %v138 = vrot.slane %v137, 2
      %v139 = vadd.f32 %v137, %v138
      %v140 = vrot.slane %v139, 1
      %v141 = vadd.f32 %v139, %v140
      %v142 = vsel %vm134, %v126, 0.0
      %v143 = vrot.slane %v142, 4
      %v144 = vadd.f32 %v142, %v143
      %v145 = vrot.slane %v144, 2
      %v146 = vadd.f32 %v144, %v145
      %v147 = vrot.slane %v146, 1
      %v148 = vadd.f32 %v146, %v147
      %v149 = vsel %vm134, %v119, 0.0
      %v150 = vrot.slane %v149, 4
      %v151 = vadd.f32 %v149, %v150
      %v152 = vrot.slane %v151, 2
      %v153 = vadd.f32 %v151, %v152
      %v154 = vrot.slane %v153, 1
      %v155 = vadd.f32 %v153, %v154
      %v156 = vsel %vm134, %v127, 0.0
      %v157 = vrot.slane %v156, 4
      %v158 = vadd.f32 %v156, %v157
      %v159 = vrot.slane %v158, 2
      %v160 = vadd.f32 %v158, %v159
      %v161 = vrot.slane %v160, 1
      %v162 = vadd.f32 %v160, %v161
      %v163 = vsel %vm134, %v120, 0.0
      %v164 = vrot.slane %v163, 4
      %v165 = vadd.f32 %v163, %v164
      %v166 = vrot.slane %v165, 2
      %v167 = vadd.f32 %v165, %v166
      %v168 = vrot.slane %v167, 1
      %v169 = vadd.f32 %v167, %v168
      %v170 = vsel %vm134, %v128, 0.0
      %v171 = vrot.slane %v170, 4
      %v172 = vadd.f32 %v170, %v171
      %v173 = vrot.slane %v172, 2
      %v174 = vadd.f32 %v172, %v173
      %v175 = vrot.slane %v174, 1
      %v176 = vadd.f32 %v174, %v175
      %v177 = vsel %vm134, %v121, 0.0
      %v178 = vrot.slane %v177, 4
      %v179 = vadd.f32 %v177, %v178
      %v180 = vrot.slane %v179, 2
      %v181 = vadd.f32 %v179, %v180
      %v182 = vrot.slane %v181, 1
      %v183 = vadd.f32 %v181, %v182
      %v184 = vsel %vm134, %v129, 0.0
      %v185 = vrot.slane %v184, 4
      %v186 = vadd.f32 %v184, %v185
      %v187 = vrot.slane %v186, 2
      %v188 = vadd.f32 %v186, %v187
      %v189 = vrot.slane %v188, 1
      %v190 = vadd.f32 %v188, %v189
      %v191 = vmul.f32 %v141, 0.33333334
      %v192 = vmul.f32 %v148, 0.33333334
      %v193 = vmul.f32 %v155, 0.33333334
      %v194 = vmul.f32 %v162, 0.33333334
      %v195 = vmul.f32 %v169, 0.33333334
      %v196 = vmul.f32 %v176, 0.33333334
      %v197 = vmul.f32 %v183, 0.33333334
      %v198 = vmul.f32 %v190, 0.33333334
      %v207 = vcombine.low %v191, %v192
      %v208 = vcombine.low %v193, %v194
      %v209 = vcombine.low %v195, %v196
      %v210 = vcombine.low %v197, %v198
      %v212 = vunpack.c.l.s4 1966171168
      %v213 = vunpack.c.0.s8 %v212
      %v214 = vlaneseq
      %v215 = vshrl.u32 %v214, 7
      %v216 = vsub.s32 %v213, %v215
      %v217 = vrot.slane %v207, %v216
      %v219 = vunpack.c.l.s4 1966171168
      %v220 = vunpack.c.0.s8 %v219
      %v221 = vlaneseq
      %v222 = vshrl.u32 %v221, 7
      %v223 = vsub.s32 %v220, %v222
      %v224 = vrot.slane %v208, %v223
      %v226 = vunpack.c.l.s4 1966171168
      %v227 = vunpack.c.0.s8 %v226
      %v228 = vlaneseq
      %v229 = vshrl.u32 %v228, 7
      %v230 = vsub.s32 %v227, %v229
      %v231 = vrot.slane %v209, %v230
      %v233 = vunpack.c.l.s4 1966171168
      %v234 = vunpack.c.0.s8 %v233
      %v235 = vlaneseq
      %v236 = vshrl.u32 %v235, 7
      %v237 = vsub.s32 %v234, %v236
      %v238 = vrot.slane %v210, %v237
      %v239 = vcombine.low %v217, %v224
      %v240 = vcombine.low %v231, %v238
      %v242 = vunpack.c.l.s4 1966171168
      %v243 = vunpack.c.0.s8 %v242
      %v244 = vlaneseq
      %v245 = vshrl.u32 %v244, 7
      %v246 = vsub.s32 %v243, %v245
      %v247 = vrot.slane %v239, %v246
      %v249 = vunpack.c.l.s4 1966171168
      %v250 = vunpack.c.0.s8 %v249
      %v251 = vlaneseq
      %v252 = vshrl.u32 %v251, 7
      %v253 = vsub.s32 %v250, %v252
      %v254 = vrot.slane %v240, %v253
      %v255 = vcombine.low %v247, %v254
      %257 = vst [vmem:[%s116] sm:$0xff] %v255
      %s258 = smul.u32 8, %s12
      %p259 = scmp.lt.s32.totalorder %s258, 31
      %s260 = scalar_select %p259, %s258, 31
      %s261 = scalar_lea.vmem %s1, %s260
      // Predicated region
      $region25: #{sum_kernel_forward.1} parent=23 // pred_check
        %p262 = pneg %p56
      $region26: #{sum_kernel_forward.1} parent=23 // pred_check_branch
        %264 = sbr.rel (%p262) target = $region28
      $region27: #{sum_kernel_forward.1} parent=23 // pred_region
        %s265 = smul.u32 8, %s12
      $region28: #{sum_kernel_forward.1} parent=23 // pred_fallthru
        _
    $region24: #{sum_kernel_forward.1} parent=5 // pred_fallthru
      _
    %p266 = scmp.le.s32.totalorder 2, %s7
    // Predicated region
    $region29: #{sum_kernel_forward.1} parent=5 // pred_check
      %p267 = pneg %p266
    $region30: #{sum_kernel_forward.1} parent=5 // pred_check_branch
      %269 = sbr.rel (%p267) target = $region32
    $region31: #{sum_kernel_forward.1} parent=5 // pred_region
      %s270 = ssub.s32 %s7, 2
      // Predicated region
      $region33: #{sum_kernel_forward.1} parent=31 // pred_check
        %p271 = pneg %p62
      $region34: #{sum_kernel_forward.1} parent=31 // pred_check_branch
        %273 = sbr.rel (%p271) target = $region36
      $region35: #{sum_kernel_forward.1} parent=31 // pred_region
        %s274 = smul.u32 8, %s13
        %p275 = scmp.lt.s32.totalorder %s274, 31
        %s276 = scalar_select %p275, %s274, 31
        %s277 = scalar_lea.vmem %s1, %s276
      $region36: #{sum_kernel_forward.1} parent=31 // pred_fallthru
        _
    $region32: #{sum_kernel_forward.1} parent=5 // pred_fallthru
      _
  $region6: #{sum_kernel_forward.1} parent=0 // loop_footer
    %s11 = sadd.s32 1, %s7
  $region7: #{sum_kernel_forward.1} parent=0 // loop_footer_branch
    %6 = sbr.rel target = $region3
  $region8: #{sum_kernel_forward.1} parent=0 // loop_exit
    _

</llo_original>
